<compile_context>
chip_gen: v5e
topology: v5e:2x2
jax: 0.10.0
libtpu: 0.0.40
codegen_flags: <defaults>
</compile_context>

<pallas_src>
import jax
import jax.numpy as jnp
from jax.experimental import pallas as pl
from jax.experimental.pallas import tpu as pltpu


def _pad8(n):
    return -(-max(int(n), 1) // 8) * 8


def _pad_lane(n):
    return -(-max(int(n), 1) // 128) * 128


def _attention_block_kernel(consts_ref, x_ref, vp_ref, o_ref):
    """One (Bblk, C, L) batch slab of the fused attention block.

    consts_ref (SMEM, flat f32):
        [ A  (C_in*Cv, row-major; A[i,j] = (Wq^T Wk)[i,j]) |
          Wv (C_in*Cv, row-major; Wv[c,j])                 |
          u  (C_in) = Wq^T bk                              |
          bv (C_in)                                        |
          w  (Cv)   = Wk^T bq ]
    x_ref : (Bblk, C_in, L)   vp_ref : (Bblk, Cv, L)   o_ref : (Bblk, C_in, L)
    """
    c_in = x_ref.shape[1]
    cv = vp_ref.shape[1]
    off_a = 0
    off_wv = c_in * cv
    off_u = 2 * c_in * cv
    off_bv = off_u + c_in
    off_w = off_bv + c_in

    # Load each Vpinv channel once as a lane-dense (Bblk, L) f32 slab.
    vp = [vp_ref[:, j, :].astype(jnp.float32) for j in range(cv)]

    # scores[b,l] = sum_j w[j]*vp_j + sum_i x_i * (u[i] + sum_j A[i,j]*vp_j)
    # (the constant bq.bk term is softmax-invariant and dropped).
    scores = consts_ref[off_w] * vp[0]
    for j in range(1, cv):
        scores = scores + consts_ref[off_w + j] * vp[j]
    for i in range(c_in):
        qk_i = consts_ref[off_u + i] + consts_ref[off_a + i * cv] * vp[0]
        for j in range(1, cv):
            qk_i = qk_i + consts_ref[off_a + i * cv + j] * vp[j]
        scores = scores + x_ref[:, i, :].astype(jnp.float32) * qk_i

    # Softmax over L (the 128-lane axis): lane reductions + EUP exp.
    m = jnp.max(scores, axis=-1, keepdims=True)            # (Bblk, 1)
    e = jnp.exp(scores - m)                                 # (Bblk, L)
    denom = jnp.sum(e, axis=-1, keepdims=True)              # (Bblk, 1)
    attn = e * pl.reciprocal(denom, approx=False)           # (Bblk, L)

    # out[:, c, :] = x_c - attn * (bv[c] + sum_j Wv[c,j]*vp_j), per channel so
    # no (Bblk, C_in, L) value temporary is ever live.
    for c in range(c_in):
        v_c = consts_ref[off_bv + c] + consts_ref[off_wv + c * cv] * vp[0]
        for j in range(1, cv):
            v_c = v_c + consts_ref[off_wv + c * cv + j] * vp[j]
        o_ref[:, c, :] = (x_ref[:, c, :].astype(jnp.float32)
                          - attn * v_c).astype(o_ref.dtype)


def _pick_block_b(batch, c_in, cv, length, *, budget_bytes=5 << 20,
                  min_steps=4, max_block=256):
    """Batch rows per grid step, VMEM-budgeted.

    Budget covers one copy of (x + out + vp) blocks in padded f32 VMEM layout;
    the double-buffered total plus temporaries then lands around 10-12 MiB,
    safe on v5e/v6e (128 MiB) and v7x (64 MiB).  Also keeps >= min_steps grid
    steps (when batch allows) so both v7x TensorCores get >= 2 steps each and
    the pipeline has prefetch/writeback overlap, and only returns divisors of
    batch so there is never a padded edge block.
    """
    row_bytes = (2 * _pad8(c_in) + _pad8(cv)) * _pad_lane(length) * 4
    by_vmem = max(1, budget_bytes // row_bytes)
    by_steps = max(1, batch // min_steps)
    target = int(max(1, min(by_vmem, by_steps, max_block, batch)))
    divisors = [bb for bb in range(1, target + 1) if batch % bb == 0]
    best = divisors[-1]
    # Prefer an even number of grid steps (v7x megacore balance) if we do not
    # have to shrink the block by more than 2x to get it.
    even = [bb for bb in divisors if (batch // bb) % 2 == 0 and 2 * bb >= best]
    if even:
        best = even[-1]
    return best


def attention_block(x, vpinv, params, *, block_b=None, donate_x=False):
    """x: (B, C_in, L), vpinv: (B, Cv, L) -> (B, C_in, L).  Channels-first
    (PyTorch NCL) end-to-end -- no wrapper transposes."""
    wq, bq, wk, bk, wv, bv = params
    B, C_in, L = x.shape
    Bv, Cv, Lv = vpinv.shape
    assert (Bv, Lv) == (B, L), "x / Vpinv batch or length mismatch"
    f32 = jnp.float32

    # Algebraic Q/K fusion (tiny matrices, computed once outside the kernel).
    A = jnp.dot(wq.T.astype(f32), wk.astype(f32))        # (C_in, Cv) = Wq^T Wk
    u = jnp.dot(wq.T.astype(f32), bk.astype(f32))        # (C_in,)    = Wq^T bk
    w = jnp.dot(wk.T.astype(f32), bq.astype(f32))        # (Cv,)      = Wk^T bq
    consts = jnp.concatenate([
        A.reshape(-1),                    # off 0
        wv.astype(f32).reshape(-1),       # off C_in*Cv
        u.reshape(-1),                    # off 2*C_in*Cv
        bv.astype(f32).reshape(-1),       # off 2*C_in*Cv + C_in
        w.reshape(-1),                    # off 2*C_in*Cv + 2*C_in
    ]).astype(f32)

    if block_b is None:
        block_b = _pick_block_b(B, C_in, Cv, L)
    if B % block_b != 0:
        raise ValueError(f"block_b={block_b} must divide batch={B} "
                         "(padded edge blocks would feed garbage to softmax)")
    grid = (B // block_b,)

    # Explicit VMEM budget: double-buffered I/O blocks + in-kernel temporaries.
    block_bytes = block_b * (2 * _pad8(C_in) + _pad8(Cv)) * _pad_lane(L) * 4
    temp_bytes = block_b * _pad_lane(L) * 4 * (Cv + 6)
    vmem_limit = int(min(48 << 20,
                         max(32 << 20, 2 * block_bytes + temp_bytes + (1 << 20))))

    # Advisory cost: ~3 streamed arrays, tiny flops, one exp per position.
    x_item = jnp.dtype(x.dtype).itemsize
    vp_item = jnp.dtype(vpinv.dtype).itemsize
    bytes_accessed = int(B * L * (2 * C_in * x_item + Cv * vp_item)
                         + consts.size * 4)
    flops = int(B * L * (2 * Cv + 2 * C_in * (2 * Cv + 2) + 5))
    cost = pl.CostEstimate(flops=flops, transcendentals=int(B * L),
                           bytes_accessed=bytes_accessed)

    extra = {}
    if donate_x:
        # Inputs are (consts, x, vpinv): x is input index 1, output index 0.
        extra["input_output_aliases"] = {1: 0}

    return pl.pallas_call(
        _attention_block_kernel,
        out_shape=jax.ShapeDtypeStruct((B, C_in, L), x.dtype),
        grid_spec=pltpu.PrefetchScalarGridSpec(
            num_scalar_prefetch=0,
            grid=grid,
            in_specs=[
                pl.BlockSpec(memory_space=pltpu.MemorySpace.SMEM),
                pl.BlockSpec((block_b, C_in, L), lambda b: (b, 0, 0)),
                pl.BlockSpec((block_b, Cv, L), lambda b: (b, 0, 0)),
            ],
            out_specs=pl.BlockSpec((block_b, C_in, L), lambda b: (b, 0, 0)),
        ),
        compiler_params=pltpu.CompilerParams(
            dimension_semantics=("parallel",),
            vmem_limit_bytes=vmem_limit),
        cost_estimate=cost,
        **extra,
    )(consts, x, vpinv)


def init_params(key, in_channels, v_channels=2):
    """Deterministic synthetic parameters with the shapes the module implies
    (1x1 Conv1d weights with the kernel dim squeezed)."""
    ks = jax.random.split(key, 6)
    wq = jax.random.normal(ks[0], (64, in_channels), jnp.float32) * 0.1   # query_conv.weight
    bq = jax.random.normal(ks[1], (64,), jnp.float32) * 0.1
    wk = jax.random.normal(ks[2], (64, v_channels), jnp.float32) * 0.1    # key_conv.weight
    bk = jax.random.normal(ks[3], (64,), jnp.float32) * 0.1
    wv = jax.random.normal(ks[4], (in_channels, v_channels), jnp.float32) * 0.1  # value_conv.weight
    bv = jax.random.normal(ks[5], (in_channels,), jnp.float32) * 0.1
    return (wq, bq, wk, bk, wv, bv)


def _reference(x, vpinv, params):
    """Plain-JAX reference mirroring the PyTorch forward."""
    wq, bq, wk, bk, wv, bv = params
    Q = jnp.einsum('oc,bcl->bol', wq, x) + bq[None, :, None]
    K = jnp.einsum('oc,bcl->bol', wk, vpinv) + bk[None, :, None]
    V = jnp.einsum('oc,bcl->bol', wv, vpinv) + bv[None, :, None]
    scores = jnp.einsum('bcl,bcl->bl', Q, K)
    attn = jax.nn.softmax(scores, axis=-1)[:, None, :]
    return x - attn * V


if __name__ == "__main__":
    key = jax.random.PRNGKey(0)

    # Small shapes consistent with the module (B, in_channels, L) / (B, 2, L).
    B, C_in, Cv, L = 2, 4, 2, 16
    kx, kv, kp = jax.random.split(key, 3)
    x = jax.random.normal(kx, (B, C_in, L), jnp.float32)
    vpinv = jax.random.normal(kv, (B, Cv, L), jnp.float32)
    params = init_params(kp, C_in, Cv)

    out = attention_block(x, vpinv, params)
    out = jax.block_until_ready(out)
    ref = _reference(x, vpinv, params)
    assert out.shape == (B, C_in, L)
    assert jnp.allclose(out, ref, atol=1e-5, rtol=1e-5), "mismatch vs reference"

    # A slightly larger case to exercise a multi-step grid (>= 4 steps).
    B2, L2 = 8, 256
    kx2, kv2 = jax.random.split(jax.random.PRNGKey(1), 2)
    x2 = jax.random.normal(kx2, (B2, C_in, L2), jnp.float32)
    vp2 = jax.random.normal(kv2, (B2, Cv, L2), jnp.float32)
    out2 = jax.block_until_ready(attention_block(x2, vp2, params))
    ref2 = _reference(x2, vp2, params)
    assert jnp.allclose(out2, ref2, atol=1e-5, rtol=1e-5), "mismatch (case 2)"

    print("KERNEL_OK")
</pallas_src>

<mosaic_0001>
module attributes {stable_mosaic.version = 11 : i64} {
  func.func @_attention_block_kernel(%arg0: i32, %arg1: memref<26xf32, #tpu.memory_space<smem>>, %arg2: memref<1x4x16xf32, #tpu.memory_space<vmem>>, %arg3: memref<1x2x16xf32, #tpu.memory_space<vmem>>, %arg4: memref<1x4x16xf32, #tpu.memory_space<vmem>>) attributes {dimension_semantics = [#tpu.dimension_semantics<parallel>], iteration_bounds = array<i64: 2>, scalar_prefetch = 0 : i64, scratch_operands = 0 : i64, tpu.core_type = #tpu.core_type<tc>, window_params = [{transform_indices = @transform_0, window_bounds = array<i64: 26>}, {transform_indices = @transform_1, window_bounds = array<i64: 1, 4, 16>}, {transform_indices = @transform_2, window_bounds = array<i64: 1, 2, 16>}, {transform_indices = @transform_3, window_bounds = array<i64: 1, 4, 16>}]} {
    %c0 = arith.constant 0 : index
    %c0_0 = arith.constant 0 : index
    %c0_1 = arith.constant 0 : index
    %0 = vector.load %arg3[%c0, %c0_0, %c0_1] : memref<1x2x16xf32, #tpu.memory_space<vmem>>, vector<1x1x16xf32>
    %1 = vector.shape_cast %0 : vector<1x1x16xf32> to vector<1x16xf32>
    %c0_2 = arith.constant 0 : index
    %c1 = arith.constant 1 : index
    %c0_3 = arith.constant 0 : index
    %2 = vector.load %arg3[%c0_2, %c1, %c0_3] : memref<1x2x16xf32, #tpu.memory_space<vmem>>, vector<1x1x16xf32>
    %3 = vector.shape_cast %2 : vector<1x1x16xf32> to vector<1x16xf32>
    %c24 = arith.constant 24 : index
    %4 = memref.load %arg1[%c24] : memref<26xf32, #tpu.memory_space<smem>>
    %5 = vector.broadcast %4 : f32 to vector<1x16xf32>
    %6 = arith.mulf %5, %1 : vector<1x16xf32>
    %c25 = arith.constant 25 : index
    %7 = memref.load %arg1[%c25] : memref<26xf32, #tpu.memory_space<smem>>
    %8 = vector.broadcast %7 : f32 to vector<1x16xf32>
    %9 = arith.mulf %8, %3 : vector<1x16xf32>
    %10 = arith.addf %6, %9 : vector<1x16xf32>
    %c16 = arith.constant 16 : index
    %11 = memref.load %arg1[%c16] : memref<26xf32, #tpu.memory_space<smem>>
    %c0_4 = arith.constant 0 : index
    %12 = memref.load %arg1[%c0_4] : memref<26xf32, #tpu.memory_space<smem>>
    %13 = vector.broadcast %12 : f32 to vector<1x16xf32>
    %14 = arith.mulf %13, %1 : vector<1x16xf32>
    %15 = vector.broadcast %11 : f32 to vector<1x16xf32>
    %16 = arith.addf %15, %14 : vector<1x16xf32>
    %c1_5 = arith.constant 1 : index
    %17 = memref.load %arg1[%c1_5] : memref<26xf32, #tpu.memory_space<smem>>
    %18 = vector.broadcast %17 : f32 to vector<1x16xf32>
    %19 = arith.mulf %18, %3 : vector<1x16xf32>
    %20 = arith.addf %16, %19 : vector<1x16xf32>
    %c0_6 = arith.constant 0 : index
    %c0_7 = arith.constant 0 : index
    %c0_8 = arith.constant 0 : index
    %21 = vector.load %arg2[%c0_6, %c0_7, %c0_8] : memref<1x4x16xf32, #tpu.memory_space<vmem>>, vector<1x1x16xf32>
    %22 = vector.shape_cast %21 : vector<1x1x16xf32> to vector<1x16xf32>
    %23 = arith.mulf %22, %20 : vector<1x16xf32>
    %24 = arith.addf %10, %23 : vector<1x16xf32>
    %c17 = arith.constant 17 : index
    %25 = memref.load %arg1[%c17] : memref<26xf32, #tpu.memory_space<smem>>
    %c2 = arith.constant 2 : index
    %26 = memref.load %arg1[%c2] : memref<26xf32, #tpu.memory_space<smem>>
    %27 = vector.broadcast %26 : f32 to vector<1x16xf32>
    %28 = arith.mulf %27, %1 : vector<1x16xf32>
    %29 = vector.broadcast %25 : f32 to vector<1x16xf32>
    %30 = arith.addf %29, %28 : vector<1x16xf32>
    %c3 = arith.constant 3 : index
    %31 = memref.load %arg1[%c3] : memref<26xf32, #tpu.memory_space<smem>>
    %32 = vector.broadcast %31 : f32 to vector<1x16xf32>
    %33 = arith.mulf %32, %3 : vector<1x16xf32>
    %34 = arith.addf %30, %33 : vector<1x16xf32>
    %c0_9 = arith.constant 0 : index
    %c1_10 = arith.constant 1 : index
    %c0_11 = arith.constant 0 : index
    %35 = vector.load %arg2[%c0_9, %c1_10, %c0_11] : memref<1x4x16xf32, #tpu.memory_space<vmem>>, vector<1x1x16xf32>
    %36 = vector.shape_cast %35 : vector<1x1x16xf32> to vector<1x16xf32>
    %37 = arith.mulf %36, %34 : vector<1x16xf32>
    %38 = arith.addf %24, %37 : vector<1x16xf32>
    %c18 = arith.constant 18 : index
    %39 = memref.load %arg1[%c18] : memref<26xf32, #tpu.memory_space<smem>>
    %c4 = arith.constant 4 : index
    %40 = memref.load %arg1[%c4] : memref<26xf32, #tpu.memory_space<smem>>
    %41 = vector.broadcast %40 : f32 to vector<1x16xf32>
    %42 = arith.mulf %41, %1 : vector<1x16xf32>
    %43 = vector.broadcast %39 : f32 to vector<1x16xf32>
    %44 = arith.addf %43, %42 : vector<1x16xf32>
    %c5 = arith.constant 5 : index
    %45 = memref.load %arg1[%c5] : memref<26xf32, #tpu.memory_space<smem>>
    %46 = vector.broadcast %45 : f32 to vector<1x16xf32>
    %47 = arith.mulf %46, %3 : vector<1x16xf32>
    %48 = arith.addf %44, %47 : vector<1x16xf32>
    %c0_12 = arith.constant 0 : index
    %c2_13 = arith.constant 2 : index
    %c0_14 = arith.constant 0 : index
    %49 = vector.load %arg2[%c0_12, %c2_13, %c0_14] : memref<1x4x16xf32, #tpu.memory_space<vmem>>, vector<1x1x16xf32>
    %50 = vector.shape_cast %49 : vector<1x1x16xf32> to vector<1x16xf32>
    %51 = arith.mulf %50, %48 : vector<1x16xf32>
    %52 = arith.addf %38, %51 : vector<1x16xf32>
    %c19 = arith.constant 19 : index
    %53 = memref.load %arg1[%c19] : memref<26xf32, #tpu.memory_space<smem>>
    %c6 = arith.constant 6 : index
    %54 = memref.load %arg1[%c6] : memref<26xf32, #tpu.memory_space<smem>>
    %55 = vector.broadcast %54 : f32 to vector<1x16xf32>
    %56 = arith.mulf %55, %1 : vector<1x16xf32>
    %57 = vector.broadcast %53 : f32 to vector<1x16xf32>
    %58 = arith.addf %57, %56 : vector<1x16xf32>
    %c7 = arith.constant 7 : index
    %59 = memref.load %arg1[%c7] : memref<26xf32, #tpu.memory_space<smem>>
    %60 = vector.broadcast %59 : f32 to vector<1x16xf32>
    %61 = arith.mulf %60, %3 : vector<1x16xf32>
    %62 = arith.addf %58, %61 : vector<1x16xf32>
    %c0_15 = arith.constant 0 : index
    %c3_16 = arith.constant 3 : index
    %c0_17 = arith.constant 0 : index
    %63 = vector.load %arg2[%c0_15, %c3_16, %c0_17] : memref<1x4x16xf32, #tpu.memory_space<vmem>>, vector<1x1x16xf32>
    %64 = vector.shape_cast %63 : vector<1x1x16xf32> to vector<1x16xf32>
    %65 = arith.mulf %64, %62 : vector<1x16xf32>
    %66 = arith.addf %52, %65 : vector<1x16xf32>
    %cst = arith.constant dense<0xFF800000> : vector<1xf32>
    %67 = vector.multi_reduction <maximumf>, %66, %cst [1] : vector<1x16xf32> to vector<1xf32>
    %68 = vector.shape_cast %67 : vector<1xf32> to vector<1x1xf32>
    %69 = vector.broadcast %68 : vector<1x1xf32> to vector<1x16xf32>
    %70 = arith.subf %66, %69 : vector<1x16xf32>
    %71 = math.exp %70 : vector<1x16xf32>
    %cst_18 = arith.constant dense<0.000000e+00> : vector<1xf32>
    %72 = vector.multi_reduction <add>, %71, %cst_18 [1] : vector<1x16xf32> to vector<1xf32>
    %73 = vector.shape_cast %72 : vector<1xf32> to vector<1x1xf32>
    %74 = tpu.reciprocal %73 : vector<1x1xf32> -> vector<1x1xf32>
    %75 = vector.broadcast %74 : vector<1x1xf32> to vector<1x16xf32>
    %76 = arith.mulf %71, %75 : vector<1x16xf32>
    %c20 = arith.constant 20 : index
    %77 = memref.load %arg1[%c20] : memref<26xf32, #tpu.memory_space<smem>>
    %c8 = arith.constant 8 : index
    %78 = memref.load %arg1[%c8] : memref<26xf32, #tpu.memory_space<smem>>
    %79 = vector.broadcast %78 : f32 to vector<1x16xf32>
    %80 = arith.mulf %79, %1 : vector<1x16xf32>
    %81 = vector.broadcast %77 : f32 to vector<1x16xf32>
    %82 = arith.addf %81, %80 : vector<1x16xf32>
    %c9 = arith.constant 9 : index
    %83 = memref.load %arg1[%c9] : memref<26xf32, #tpu.memory_space<smem>>
    %84 = vector.broadcast %83 : f32 to vector<1x16xf32>
    %85 = arith.mulf %84, %3 : vector<1x16xf32>
    %86 = arith.addf %82, %85 : vector<1x16xf32>
    %c0_19 = arith.constant 0 : index
    %c0_20 = arith.constant 0 : index
    %c0_21 = arith.constant 0 : index
    %87 = vector.load %arg2[%c0_19, %c0_20, %c0_21] : memref<1x4x16xf32, #tpu.memory_space<vmem>>, vector<1x1x16xf32>
    %88 = vector.shape_cast %87 : vector<1x1x16xf32> to vector<1x16xf32>
    %89 = arith.mulf %76, %86 : vector<1x16xf32>
    %90 = arith.subf %88, %89 : vector<1x16xf32>
    %c0_22 = arith.constant 0 : index
    %c0_23 = arith.constant 0 : index
    %c0_24 = arith.constant 0 : index
    %91 = vector.load %arg4[%c0_22, %c0_23, %c0_24] : memref<1x4x16xf32, #tpu.memory_space<vmem>>, vector<1x1x16xf32>
    %92 = vector.shape_cast %91 : vector<1x1x16xf32> to vector<1x16xf32>
    %93 = vector.shape_cast %90 : vector<1x16xf32> to vector<1x1x16xf32>
    tpu.vector_store %arg4[%c0_22, %c0_23, %c0_24], %93 {strides = array<i32>} : memref<1x4x16xf32, #tpu.memory_space<vmem>>, vector<1x1x16xf32>,
    %c21 = arith.constant 21 : index
    %94 = memref.load %arg1[%c21] : memref<26xf32, #tpu.memory_space<smem>>
    %c10 = arith.constant 10 : index
    %95 = memref.load %arg1[%c10] : memref<26xf32, #tpu.memory_space<smem>>
    %96 = vector.broadcast %95 : f32 to vector<1x16xf32>
    %97 = arith.mulf %96, %1 : vector<1x16xf32>
    %98 = vector.broadcast %94 : f32 to vector<1x16xf32>
    %99 = arith.addf %98, %97 : vector<1x16xf32>
    %c11 = arith.constant 11 : index
    %100 = memref.load %arg1[%c11] : memref<26xf32, #tpu.memory_space<smem>>
    %101 = vector.broadcast %100 : f32 to vector<1x16xf32>
    %102 = arith.mulf %101, %3 : vector<1x16xf32>
    %103 = arith.addf %99, %102 : vector<1x16xf32>
    %c0_25 = arith.constant 0 : index
    %c1_26 = arith.constant 1 : index
    %c0_27 = arith.constant 0 : index
    %104 = vector.load %arg2[%c0_25, %c1_26, %c0_27] : memref<1x4x16xf32, #tpu.memory_space<vmem>>, vector<1x1x16xf32>
    %105 = vector.shape_cast %104 : vector<1x1x16xf32> to vector<1x16xf32>
    %106 = arith.mulf %76, %103 : vector<1x16xf32>
    %107 = arith.subf %105, %106 : vector<1x16xf32>
    %c0_28 = arith.constant 0 : index
    %c1_29 = arith.constant 1 : index
    %c0_30 = arith.constant 0 : index
    %108 = vector.load %arg4[%c0_28, %c1_29, %c0_30] : memref<1x4x16xf32, #tpu.memory_space<vmem>>, vector<1x1x16xf32>
    %109 = vector.shape_cast %108 : vector<1x1x16xf32> to vector<1x16xf32>
    %110 = vector.shape_cast %107 : vector<1x16xf32> to vector<1x1x16xf32>
    tpu.vector_store %arg4[%c0_28, %c1_29, %c0_30], %110 {strides = array<i32>} : memref<1x4x16xf32, #tpu.memory_space<vmem>>, vector<1x1x16xf32>,
    %c22 = arith.constant 22 : index
    %111 = memref.load %arg1[%c22] : memref<26xf32, #tpu.memory_space<smem>>
    %c12 = arith.constant 12 : index
    %112 = memref.load %arg1[%c12] : memref<26xf32, #tpu.memory_space<smem>>
    %113 = vector.broadcast %112 : f32 to vector<1x16xf32>
    %114 = arith.mulf %113, %1 : vector<1x16xf32>
    %115 = vector.broadcast %111 : f32 to vector<1x16xf32>
    %116 = arith.addf %115, %114 : vector<1x16xf32>
    %c13 = arith.constant 13 : index
    %117 = memref.load %arg1[%c13] : memref<26xf32, #tpu.memory_space<smem>>
    %118 = vector.broadcast %117 : f32 to vector<1x16xf32>
    %119 = arith.mulf %118, %3 : vector<1x16xf32>
    %120 = arith.addf %116, %119 : vector<1x16xf32>
    %c0_31 = arith.constant 0 : index
    %c2_32 = arith.constant 2 : index
    %c0_33 = arith.constant 0 : index
    %121 = vector.load %arg2[%c0_31, %c2_32, %c0_33] : memref<1x4x16xf32, #tpu.memory_space<vmem>>, vector<1x1x16xf32>
    %122 = vector.shape_cast %121 : vector<1x1x16xf32> to vector<1x16xf32>
    %123 = arith.mulf %76, %120 : vector<1x16xf32>
    %124 = arith.subf %122, %123 : vector<1x16xf32>
    %c0_34 = arith.constant 0 : index
    %c2_35 = arith.constant 2 : index
    %c0_36 = arith.constant 0 : index
    %125 = vector.load %arg4[%c0_34, %c2_35, %c0_36] : memref<1x4x16xf32, #tpu.memory_space<vmem>>, vector<1x1x16xf32>
    %126 = vector.shape_cast %125 : vector<1x1x16xf32> to vector<1x16xf32>
    %127 = vector.shape_cast %124 : vector<1x16xf32> to vector<1x1x16xf32>
    tpu.vector_store %arg4[%c0_34, %c2_35, %c0_36], %127 {strides = array<i32>} : memref<1x4x16xf32, #tpu.memory_space<vmem>>, vector<1x1x16xf32>,
    %c23 = arith.constant 23 : index
    %128 = memref.load %arg1[%c23] : memref<26xf32, #tpu.memory_space<smem>>
    %c14 = arith.constant 14 : index
    %129 = memref.load %arg1[%c14] : memref<26xf32, #tpu.memory_space<smem>>
    %130 = vector.broadcast %129 : f32 to vector<1x16xf32>
    %131 = arith.mulf %130, %1 : vector<1x16xf32>
    %132 = vector.broadcast %128 : f32 to vector<1x16xf32>
    %133 = arith.addf %132, %131 : vector<1x16xf32>
    %c15 = arith.constant 15 : index
    %134 = memref.load %arg1[%c15] : memref<26xf32, #tpu.memory_space<smem>>
    %135 = vector.broadcast %134 : f32 to vector<1x16xf32>
    %136 = arith.mulf %135, %3 : vector<1x16xf32>
    %137 = arith.addf %133, %136 : vector<1x16xf32>
    %c0_37 = arith.constant 0 : index
    %c3_38 = arith.constant 3 : index
    %c0_39 = arith.constant 0 : index
    %138 = vector.load %arg2[%c0_37, %c3_38, %c0_39] : memref<1x4x16xf32, #tpu.memory_space<vmem>>, vector<1x1x16xf32>
    %139 = vector.shape_cast %138 : vector<1x1x16xf32> to vector<1x16xf32>
    %140 = arith.mulf %76, %137 : vector<1x16xf32>
    %141 = arith.subf %139, %140 : vector<1x16xf32>
    %c0_40 = arith.constant 0 : index
    %c3_41 = arith.constant 3 : index
    %c0_42 = arith.constant 0 : index
    %142 = vector.load %arg4[%c0_40, %c3_41, %c0_42] : memref<1x4x16xf32, #tpu.memory_space<vmem>>, vector<1x1x16xf32>
    %143 = vector.shape_cast %142 : vector<1x1x16xf32> to vector<1x16xf32>
    %144 = vector.shape_cast %141 : vector<1x16xf32> to vector<1x1x16xf32>
    tpu.vector_store %arg4[%c0_40, %c3_41, %c0_42], %144 {strides = array<i32>} : memref<1x4x16xf32, #tpu.memory_space<vmem>>, vector<1x1x16xf32>,
    return
  }
  func.func @transform_0(%arg0: i32) -> i32 {
    %c0_i32 = arith.constant 0 : i32
    %c0_i32_0 = arith.constant 0 : i32
    return %c0_i32 : i32
  }
  func.func @transform_1(%arg0: i32) -> (i32, i32, i32) {
    %c0_i32 = arith.constant 0 : i32
    %c0_i32_0 = arith.constant 0 : i32
    %c0_i32_1 = arith.constant 0 : i32
    return %arg0, %c0_i32, %c0_i32_0 : i32, i32, i32
  }
  func.func @transform_2(%arg0: i32) -> (i32, i32, i32) {
    %c0_i32 = arith.constant 0 : i32
    %c0_i32_0 = arith.constant 0 : i32
    %c0_i32_1 = arith.constant 0 : i32
    return %arg0, %c0_i32, %c0_i32_0 : i32, i32, i32
  }
  func.func @transform_3(%arg0: i32) -> (i32, i32, i32) {
    %c0_i32 = arith.constant 0 : i32
    %c0_i32_0 = arith.constant 0 : i32
    %c0_i32_1 = arith.constant 0 : i32
    return %arg0, %c0_i32, %c0_i32_0 : i32, i32, i32
  }
}

</mosaic_0001>

<llo_original>
// kernel: tpu_custom_call.1
$region0: #{tpu_custom_call.1}
  #allocation0 [shape = 'u32[]', space=smem, size = 0x4, offset = 0x4, fixed_abs, tag = 'smem constant byte address 0x4 - core index']
  #allocation1 [shape = 'u32[72,128]{1,0:T(1,128)}', space=vmem, size = 0x9000, scoped, tag = 'internal scratch']
  %s0 = inlined_call_operand.hbm [shape: f32[26], index: 0, kind: input, shape index: {}]
  %s1 = inlined_call_operand.hbm [shape: f32[2,4,16], index: 1, kind: input, shape index: {}]
  %s2 = inlined_call_operand.hbm [shape: f32[2,2,16], index: 2, kind: input, shape index: {}]
  %s3 = inlined_call_operand.hbm [shape: f32[2,4,16], index: 3, kind: output, shape index: {}]
  %s4 = sld [smem:[#allocation0]]
  $region57: #{tpu_custom_call.1} parent=0
    _
  %s6 = ssub.s32 1, %s4
  %s7 = scalar_select 0, %s6, %s4
  $region1: #{tpu_custom_call.1} parent=0
    #allocation2 [shape = 'u8[512]{0}', space=smem, size = 0x200, scoped, tag = 'input window, operand 0, single buffered']
    #allocation3 [shape = 's32[2]{0}', space=sflag, size = 0x8, scoped, tag = 'scoped memory for tpu_custom_call.1']
    #allocation4 [shape = 's32[2]{0}', space=sflag, size = 0x8, scoped, tag = 'scoped memory for tpu_custom_call.1']
    #allocation5 [shape = 's32[2]{0}', space=sflag, size = 0x8, scoped, tag = 'scoped memory for tpu_custom_call.1']
    #allocation6 [shape = 'u8[4096]{0}', space=vmem, size = 0x1000, scoped, tag = 'input window, operand 1']
    #allocation7 [shape = 'u8[2048]{0}', space=vmem, size = 0x800, scoped, tag = 'input window, operand 2']
    #allocation8 [shape = 's32[2]{0}', space=sflag, size = 0x8, scoped, tag = 'scoped memory for tpu_custom_call.1']
    #allocation9 [shape = 'u8[4096]{0}', space=vmem, size = 0x1000, scoped, tag = 'output window, operand 0']
    %8 = vsyncpa [#allocation5], 0
    %9 = vsyncpa [#allocation3], 0
    %s10 = scalar_lea.sflag [#allocation3], 1
    %11 = vsyncpa %s10, 0
    %12 = vsyncpa [#allocation8], 0
    %s13 = scalar_lea.sflag [#allocation8], 1
    %14 = vsyncpa %s13, 0
    %15 = vsyncpa [#allocation4], 0
    %s16 = scalar_lea.sflag [#allocation4], 1
    %17 = vsyncpa %s16, 0
    loop: start=0, step=1, limit=4
    $region2: #{tpu_custom_call.1} parent=1 // loop_pre_header
      _
    $region3: #{tpu_custom_call.1} parent=1 // loop_header
      %s19 = sphi 0, %s23
      %p20 = scmp.ge.s32.totalorder %s19, 4
      %s27 = sphi 0, %s27
      %s29 = sphi 0, %s27
      %s30 = sphi 0, %s29
      %s44 = sphi 0, %s30
      %s50 = sphi 0, %s52
      %s53 = sphi 0, %s50
      %s54 = sphi 0, %s53
      %s70 = sphi 0, %s54
      %s76 = sphi 0, %s78
      %s79 = sphi 0, %s76
      %s80 = sphi 0, %s79
      %s96 = sphi 0, %s80
      %s102 = sphi 0, %s104
      %s105 = sphi 0, %s102
      %s106 = sphi 0, %s105
      %s122 = sphi 0, %s106
    $region4: #{tpu_custom_call.1} parent=1 // loop_header_branch
      %22 = sbr.rel (%p20) target = $region8
    $region5: #{tpu_custom_call.1} parent=1 // loop_body
      %s24 = ssub.s32 %s19, 1
      %s25 = ssub.s32 %s19, 2
      %s26 = sadd.s32 %s19, 1
      %s28 = sadd.s32 %s27, 1
      %p31 = scmp.eq.s32.totalorder %s19, 1
      %p32 = scmp.ne.s32.totalorder %s27, %s29
      %p33 = scmp.eq.s32.totalorder %s19, 0
      %p34 = por %p32, %p33
      %p35 = scmp.ne.s32.totalorder %s27, %s29
      %p36 = scmp.eq.s32.totalorder %s24, 1
      %p37 = por %p35, %p36
      %p38 = scmp.ne.s32.totalorder %s29, %s30
      %p39 = scmp.eq.s32.totalorder %s24, 0
      %p40 = por %p38, %p39
      %p41 = scmp.ne.s32.totalorder %s29, %s30
      %p42 = scmp.eq.s32.totalorder %s25, 1
      %p43 = por %p41, %p42
      %p45 = scmp.ne.s32.totalorder %s30, %s44
      %p46 = scmp.eq.s32.totalorder %s25, 0
      %p47 = por %p45, %p46
      %s48 = ssub.s32 %s19, %s26
      %p49 = scmp.eq.s32.totalorder %s48, 0
      %s51 = sadd.s32 %s50, 1
      %s52 = scalar_select %p49, %s50, %s51
      %p55 = pneg %p49
      %p56 = scmp.eq.s32.totalorder %s19, 1
      %p57 = por %p55, %p56
      %p58 = scmp.ne.s32.totalorder %s50, %s53
      %p59 = scmp.eq.s32.totalorder %s19, 0
      %p60 = por %p58, %p59
      %p61 = scmp.ne.s32.totalorder %s50, %s53
      %p62 = scmp.eq.s32.totalorder %s24, 1
      %p63 = por %p61, %p62
      %p64 = scmp.ne.s32.totalorder %s53, %s54
      %p65 = scmp.eq.s32.totalorder %s24, 0
      %p66 = por %p64, %p65
      %p67 = scmp.ne.s32.totalorder %s53, %s54
      %p68 = scmp.eq.s32.totalorder %s25, 1
      %p69 = por %p67, %p68
      %p71 = scmp.ne.s32.totalorder %s54, %s70
      %p72 = scmp.eq.s32.totalorder %s25, 0
      %p73 = por %p71, %p72
      %s74 = ssub.s32 %s19, %s26
      %p75 = scmp.eq.s32.totalorder %s74, 0
      %s77 = sadd.s32 %s76, 1
      %s78 = scalar_select %p75, %s76, %s77
      %p81 = pneg %p75
      %p82 = scmp.eq.s32.totalorder %s19, 1
      %p83 = por %p81, %p82
      %p84 = scmp.ne.s32.totalorder %s76, %s79
      %p85 = scmp.eq.s32.totalorder %s19, 0
      %p86 = por %p84, %p85
      %p87 = scmp.ne.s32.totalorder %s76, %s79
      %p88 = scmp.eq.s32.totalorder %s24, 1
      %p89 = por %p87, %p88
      %p90 = scmp.ne.s32.totalorder %s79, %s80
      %p91 = scmp.eq.s32.totalorder %s24, 0
      %p92 = por %p90, %p91
      %p93 = scmp.ne.s32.totalorder %s79, %s80
      %p94 = scmp.eq.s32.totalorder %s25, 1
      %p95 = por %p93, %p94
      %p97 = scmp.ne.s32.totalorder %s80, %s96
      %p98 = scmp.eq.s32.totalorder %s25, 0
      %p99 = por %p97, %p98
      %s100 = ssub.s32 %s19, %s26
      %p101 = scmp.eq.s32.totalorder %s100, 0
      %s103 = sadd.s32 %s102, 1
      %s104 = scalar_select %p101, %s102, %s103
      %p107 = pneg %p101
      %p108 = scmp.eq.s32.totalorder %s19, 1
      %p109 = por %p107, %p108
      %p110 = scmp.ne.s32.totalorder %s102, %s105
      %p111 = scmp.eq.s32.totalorder %s19, 0
      %p112 = por %p110, %p111
      %p113 = scmp.ne.s32.totalorder %s102, %s105
      %p114 = scmp.eq.s32.totalorder %s24, 1
      %p115 = por %p113, %p114
      %p116 = scmp.ne.s32.totalorder %s105, %s106
      %p117 = scmp.eq.s32.totalorder %s24, 0
      %p118 = por %p116, %p117
      %p119 = scmp.ne.s32.totalorder %s105, %s106
      %p120 = scmp.eq.s32.totalorder %s25, 1
      %p121 = por %p119, %p120
      %p123 = scmp.ne.s32.totalorder %s106, %s122
      %p124 = scmp.eq.s32.totalorder %s25, 0
      %p125 = por %p123, %p124
      %p126 = scmp.le.s32.totalorder 1, %s19
      %p127 = scmp.lt.s32.totalorder %s19, 3
      %p128 = pnand %p126, %p127
      %p129 = pneg %p128
      // Predicated region
      $region9: #{tpu_custom_call.1} parent=5 // pred_check
        _
      $region10: #{tpu_custom_call.1} parent=5 // pred_check_branch
        %131 = sbr.rel (%p128) target = $region12
      $region11: #{tpu_custom_call.1} parent=5 // pred_region
        %s132 = ssub.s32 %s19, 1
        // Predicated region
        $region13: #{tpu_custom_call.1} parent=11 // pred_check
          %p133 = pneg %p40
        $region14: #{tpu_custom_call.1} parent=11 // pred_check_branch
          %135 = sbr.rel (%p133) target = $region16
        $region15: #{tpu_custom_call.1} parent=11 // pred_region
          %137 = vsyncadd [#allocation5], 0
          %s139 = sshll.u32 %s0, 4
          %s140 = int_to_ptr.hbm [resolvable:$true] %s139
          %142 = dma.hbm_to_smem %s140, 16, [#allocation2], [#allocation5]
        $region16: #{tpu_custom_call.1} parent=11 // pred_fallthru
          _
      $region12: #{tpu_custom_call.1} parent=5 // pred_fallthru
        _
      %p143 = scmp.lt.s32.totalorder %s19, 2
      // Predicated region
      $region17: #{tpu_custom_call.1} parent=5 // pred_check
        %p144 = pneg %p143
      $region18: #{tpu_custom_call.1} parent=5 // pred_check_branch
        %146 = sbr.rel (%p144) target = $region20
      $region19: #{tpu_custom_call.1} parent=5 // pred_region
        // Predicated region
        $region21: #{tpu_custom_call.1} parent=19 // pred_check
          %p147 = pneg %p60
        $region22: #{tpu_custom_call.1} parent=19 // pred_check_branch
          %149 = sbr.rel (%p147) target = $region24
        $region23: #{tpu_custom_call.1} parent=19 // pred_region
          %s150 = sand.u32 %s50, 1
          %s151 = scalar_lea.sflag [#allocation3], %s150
          %s152 = sand.u32 %s50, 1
          %s153 = smul.addr %s152, 4
          %s154 = scalar_lea.vmem [#allocation6], %s153
          %156 = vsyncadd %s151, 0
          %s157 = smul.addr %s19, 4
          %s158 = scalar_lea.hbm %s1, %s157
          %s160 = sshll.u32 %s158, 4
          %s161 = int_to_ptr.hbm [resolvable:$true] %s160
          %s162 = sshll.u32 %s154, 4
          %s163 = int_to_ptr.vmem [resolvable:$true] %s162
          %165 = dma.hbm_to_vmem [thread:$0]  %s161, 64, %s163, %s151
        $region24: #{tpu_custom_call.1} parent=19 // pred_fallthru
          _
        // Predicated region
        $region25: #{tpu_custom_call.1} parent=19 // pred_check
          %p166 = pneg %p86
        $region26: #{tpu_custom_call.1} parent=19 // pred_check_branch
          %168 = sbr.rel (%p166) target = $region28
        $region27: #{tpu_custom_call.1} parent=19 // pred_region
          %s169 = sand.u32 %s76, 1
          %s170 = scalar_lea.sflag [#allocation8], %s169
          %s171 = sand.u32 %s76, 1
          %s172 = smul.addr %s171, 2
          %s173 = scalar_lea.vmem [#allocation7], %s172
          %175 = vsyncadd %s170, 0
          %s176 = smul.addr %s19, 2
          %s177 = scalar_lea.hbm %s2, %s176
          %s179 = sshll.u32 %s177, 4
          %s180 = int_to_ptr.hbm [resolvable:$true] %s179
          %s181 = sshll.u32 %s173, 4
          %s182 = int_to_ptr.vmem [resolvable:$true] %s181
          %184 = dma.hbm_to_vmem [thread:$0]  %s180, 32, %s182, %s170
        $region28: #{tpu_custom_call.1} parent=19 // pred_fallthru
          _
      $region20: #{tpu_custom_call.1} parent=5 // pred_fallthru
        _
      %p185 = scmp.le.s32.totalorder 1, %s19
      %p186 = scmp.lt.s32.totalorder %s19, 3
      %p187 = pnand %p185, %p186
      %p188 = pneg %p187
      // Predicated region
      $region29: #{tpu_custom_call.1} parent=5 // pred_check
        _
      $region30: #{tpu_custom_call.1} parent=5 // pred_check_branch
        %190 = sbr.rel (%p187) target = $region32
      $region31: #{tpu_custom_call.1} parent=5 // pred_region
        %s191 = ssub.s32 %s19, 1
        // Predicated region
        $region33: #{tpu_custom_call.1} parent=31 // pred_check
          %p192 = pneg %p40
        $region34: #{tpu_custom_call.1} parent=31 // pred_check_branch
          %194 = sbr.rel (%p192) target = $region36
        $region35: #{tpu_custom_call.1} parent=31 // pred_region
          %196 = dma.done [#allocation5], 16
        $region36: #{tpu_custom_call.1} parent=31 // pred_fallthru
          _
        %s197 = sand.u32 %s53, 1
        %s198 = scalar_lea.sflag [#allocation3], %s197
        %s199 = sand.u32 %s53, 1
        %s200 = smul.addr %s199, 4
        %s201 = scalar_lea.vmem [#allocation6], %s200
        // Predicated region
        $region37: #{tpu_custom_call.1} parent=31 // pred_check
          %p202 = pneg %p66
        $region38: #{tpu_custom_call.1} parent=31 // pred_check_branch
          %204 = sbr.rel (%p202) target = $region40
        $region39: #{tpu_custom_call.1} parent=31 // pred_region
          %206 = dma.done %s198, 64
        $region40: #{tpu_custom_call.1} parent=31 // pred_fallthru
          _
        %s207 = sand.u32 %s79, 1
        %s208 = scalar_lea.sflag [#allocation8], %s207
        %s209 = sand.u32 %s79, 1
        %s210 = smul.addr %s209, 2
        %s211 = scalar_lea.vmem [#allocation7], %s210
        // Predicated region
        $region41: #{tpu_custom_call.1} parent=31 // pred_check
          %p212 = pneg %p92
        $region42: #{tpu_custom_call.1} parent=31 // pred_check_branch
          %214 = sbr.rel (%p212) target = $region44
        $region43: #{tpu_custom_call.1} parent=31 // pred_region
          %216 = dma.done %s208, 32
        $region44: #{tpu_custom_call.1} parent=31 // pred_fallthru
          _
        %217 = sfence
        %p218 = pneg %p40
        %p219 = pneg %p37
        %s220 = sand.u32 %s53, 1
        %s221 = scalar_lea.sflag [#allocation3], %s220
        %s222 = sand.u32 %s53, 1
        %s223 = smul.addr %s222, 4
        %s224 = scalar_lea.vmem [#allocation6], %s223
        %p225 = pneg %p66
        %p226 = pneg %p63
        %s227 = sand.u32 %s79, 1
        %s228 = scalar_lea.sflag [#allocation8], %s227
        %s229 = sand.u32 %s79, 1
        %s230 = smul.addr %s229, 2
        %s231 = scalar_lea.vmem [#allocation7], %s230
        %p232 = pneg %p92
        %p233 = pneg %p89
        %p234 = pneg %p118
        %p235 = pneg %p115
        %s236 = sand.u32 %s105, 1
        %s237 = scalar_lea.sflag [#allocation4], %s236
        %s238 = sand.u32 %s105, 1
        %s239 = smul.addr %s238, 4
        %s240 = scalar_lea.vmem [#allocation9], %s239
        %v241 = vld [vmem:[%s211] sm:$0x1]
        %v242 = vld [vmem:[%s211 + $0x1] sm:$0x1]
        %s243 = sld [smem:[#allocation2 + $0x18]]
        %v244 = vstv %s243
        %v245 = vmul.f32 %v244, %v241
        %s246 = sld [smem:[#allocation2 + $0x19]]
        %v247 = vstv %s246
        %v248 = vmul.f32 %v247, %v242
        %v249 = vadd.f32 %v245, %v248
        %s250 = sld [smem:[#allocation2 + $0x10]]
        %s251 = sld [smem:[#allocation2]]
        %v252 = vstv %s251
        %v253 = vmul.f32 %v252, %v241
        %v254 = vstv %s250
        %v255 = vadd.f32 %v254, %v253
        %s256 = sld [smem:[#allocation2 + $0x1]]
        %v257 = vstv %s256
        %v258 = vmul.f32 %v257, %v242
        %v259 = vadd.f32 %v255, %v258
        %v260 = vld [vmem:[%s201] sm:$0x1]
        %v261 = vmul.f32 %v260, %v259
        %v262 = vadd.f32 %v249, %v261
        %s263 = sld [smem:[#allocation2 + $0x11]]
        %s264 = sld [smem:[#allocation2 + $0x2]]
        %v265 = vstv %s264
        %v266 = vmul.f32 %v265, %v241
        %v267 = vstv %s263
        %v268 = vadd.f32 %v267, %v266
        %s269 = sld [smem:[#allocation2 + $0x3]]
        %v270 = vstv %s269
        %v271 = vmul.f32 %v270, %v242
        %v272 = vadd.f32 %v268, %v271
        %v273 = vld [vmem:[%s201 + $0x1] sm:$0x1]
        %v274 = vmul.f32 %v273, %v272
        %v275 = vadd.f32 %v262, %v274
        %s276 = sld [smem:[#allocation2 + $0x12]]
        %s277 = sld [smem:[#allocation2 + $0x4]]
        %v278 = vstv %s277
        %v279 = vmul.f32 %v278, %v241
        %v280 = vstv %s276
        %v281 = vadd.f32 %v280, %v279
        %s282 = sld [smem:[#allocation2 + $0x5]]
        %v283 = vstv %s282
        %v284 = vmul.f32 %v283, %v242
        %v285 = vadd.f32 %v281, %v284
        %v286 = vld [vmem:[%s201 + $0x2] sm:$0x1]
        %v287 = vmul.f32 %v286, %v285
        %v288 = vadd.f32 %v275, %v287
        %s289 = sld [smem:[#allocation2 + $0x13]]
        %s290 = sld [smem:[#allocation2 + $0x6]]
        %v291 = vstv %s290
        %v292 = vmul.f32 %v291, %v241
        %v293 = vstv %s289
        %v294 = vadd.f32 %v293, %v292
        %s295 = sld [smem:[#allocation2 + $0x7]]
        %v296 = vstv %s295
        %v297 = vmul.f32 %v296, %v242
        %v298 = vadd.f32 %v294, %v297
        %v299 = vld [vmem:[%s201 + $0x3] sm:$0x1]
        %v300 = vmul.f32 %v299, %v298
        %v301 = vadd.f32 %v288, %v300
        %vm302 = vcmask 122880
        %v303 = vsel %vm302, %v301, -inf
        %304 = vmax.xlane.f32.xlu0 %v303
        %v305 = vpop.xlane.xlu0 %304
        %v306 = vsub.f32 %v301, %v305
        %v307 = vmul.f32 %v306, 1.442695
        %v308 = vpow.pop %v307
        %v309 = vsel %vm302, %v308, 0.0
        %310 = vadd.xlane.f32.xlu0 %v309
        %v311 = vpop.xlane.xlu0 %310
        %v312 = vrcp.pop %v311
        %v313 = vmul.f32 %v311, %v312
        %v314 = vsub.f32 1.0, %v313
        %v315 = vmul.f32 %v312, %v314
        %v316 = vadd.f32 %v312, %v315
        %vm317 = vweird.f32 %v311
        %vm318 = vweird.f32 %v312
        %vm319 = vmor %vm317, %vm318
        %v320 = vsel %vm319, %v312, %v316
        %v321 = vand.u32 2147483647, %v311
        %vm322 = vcmp.eq.f32.partialorder %v321, 8.507059e+37
        %v323 = vand.u32 %v311, 2147483648
        %v324 = vor.u32 1.1754944e-38, %v323
        %v325 = vsel %vm322, %v324, %v320
        %v326 = vmul.f32 %v308, %v325
        %s327 = sld [smem:[#allocation2 + $0x14]]
        %s328 = sld [smem:[#allocation2 + $0x8]]
        %v329 = vstv %s328
        %v330 = vmul.f32 %v329, %v241
        %v331 = vstv %s327
        %v332 = vadd.f32 %v331, %v330
        %s333 = sld [smem:[#allocation2 + $0x9]]
        %v334 = vstv %s333
        %v335 = vmul.f32 %v334, %v242
        %v336 = vadd.f32 %v332, %v335
        %v337 = vmul.f32 %v326, %v336
        %v338 = vsub.f32 %v260, %v337
        %339 = vst.msk [vmem:[%s240] sm:$0x1] %vm302, %v338
        %s340 = sld [smem:[#allocation2 + $0x15]]
        %s341 = sld [smem:[#allocation2 + $0xa]]
        %v342 = vstv %s341
        %v343 = vmul.f32 %v342, %v241
        %v344 = vstv %s340
        %v345 = vadd.f32 %v344, %v343
        %s346 = sld [smem:[#allocation2 + $0xb]]
        %v347 = vstv %s346
        %v348 = vmul.f32 %v347, %v242
        %v349 = vadd.f32 %v345, %v348
        %v350 = vld [vmem:[%s201 + $0x1] sm:$0x1]
        %v351 = vmul.f32 %v326, %v349
        %v352 = vsub.f32 %v350, %v351
        %353 = vst.msk [vmem:[%s240 + $0x1] sm:$0x1] %vm302, %v352
        %s354 = sld [smem:[#allocation2 + $0x16]]
        %s355 = sld [smem:[#allocation2 + $0xc]]
        %v356 = vstv %s355
        %v357 = vmul.f32 %v356, %v241
        %v358 = vstv %s354
        %v359 = vadd.f32 %v358, %v357
        %s360 = sld [smem:[#allocation2 + $0xd]]
        %v361 = vstv %s360
        %v362 = vmul.f32 %v361, %v242
        %v363 = vadd.f32 %v359, %v362
        %v364 = vld [vmem:[%s201 + $0x2] sm:$0x1]
        %v365 = vmul.f32 %v326, %v363
        %v366 = vsub.f32 %v364, %v365
        %367 = vst.msk [vmem:[%s240 + $0x2] sm:$0x1] %vm302, %v366
        %s368 = sld [smem:[#allocation2 + $0x17]]
        %s369 = sld [smem:[#allocation2 + $0xe]]
        %v370 = vstv %s369
        %v371 = vmul.f32 %v370, %v241
        %v372 = vstv %s368
        %v373 = vadd.f32 %v372, %v371
        %s374 = sld [smem:[#allocation2 + $0xf]]
        %v375 = vstv %s374
        %v376 = vmul.f32 %v375, %v242
        %v377 = vadd.f32 %v373, %v376
        %v378 = vld [vmem:[%s201 + $0x3] sm:$0x1]
        %v379 = vmul.f32 %v326, %v377
        %v380 = vsub.f32 %v378, %v379
        %381 = vst.msk [vmem:[%s240 + $0x3] sm:$0x1] %vm302, %v380
        %s382 = sand.u32 %s105, 1
        %s383 = scalar_lea.sflag [#allocation4], %s382
        %s384 = sand.u32 %s105, 1
        %s385 = smul.addr %s384, 4
        %s386 = scalar_lea.vmem [#allocation9], %s385
        // Predicated region
        $region45: #{tpu_custom_call.1} parent=31 // pred_check
          %p387 = pneg %p115
        $region46: #{tpu_custom_call.1} parent=31 // pred_check_branch
          %389 = sbr.rel (%p387) target = $region48
        $region47: #{tpu_custom_call.1} parent=31 // pred_region
          %391 = vsyncadd %s383, 0
          %s392 = smul.addr %s24, 4
          %s393 = scalar_lea.hbm %s3, %s392
          %s395 = sshll.u32 %s386, 4
          %s396 = int_to_ptr.vmem [resolvable:$true] %s395
          %s397 = sshll.u32 %s393, 4
          %s398 = int_to_ptr.hbm [resolvable:$true] %s397
          %400 = dma.vmem_to_hbm [thread:$0]  %s396, 64, %s398, %s383
        $region48: #{tpu_custom_call.1} parent=31 // pred_fallthru
          _
      $region32: #{tpu_custom_call.1} parent=5 // pred_fallthru
        _
      %p401 = scmp.le.s32.totalorder 2, %s19
      // Predicated region
      $region49: #{tpu_custom_call.1} parent=5 // pred_check
        %p402 = pneg %p401
      $region50: #{tpu_custom_call.1} parent=5 // pred_check_branch
        %404 = sbr.rel (%p402) target = $region52
      $region51: #{tpu_custom_call.1} parent=5 // pred_region
        %s405 = ssub.s32 %s19, 2
        // Predicated region
        $region53: #{tpu_custom_call.1} parent=51 // pred_check
          %p406 = pneg %p121
        $region54: #{tpu_custom_call.1} parent=51 // pred_check_branch
          %408 = sbr.rel (%p406) target = $region56
        $region55: #{tpu_custom_call.1} parent=51 // pred_region
          %s409 = sand.u32 %s106, 1
          %s410 = scalar_lea.sflag [#allocation4], %s409
          %s411 = sand.u32 %s106, 1
          %s412 = smul.addr %s411, 4
          %s413 = scalar_lea.vmem [#allocation9], %s412
          %415 = dma.done %s410, 64
        $region56: #{tpu_custom_call.1} parent=51 // pred_fallthru
          _
      $region52: #{tpu_custom_call.1} parent=5 // pred_fallthru
        _
    $region6: #{tpu_custom_call.1} parent=1 // loop_footer
      %s23 = sadd.s32 1, %s19
    $region7: #{tpu_custom_call.1} parent=1 // loop_footer_branch
      %18 = sbr.rel target = $region3
    $region8: #{tpu_custom_call.1} parent=1 // loop_exit
      _
    %416 = vsyncpa [#allocation3], 1
    %s417 = scalar_lea.sflag [#allocation3], 1
    %418 = vsyncpa %s417, 1
    %419 = vsyncpa [#allocation8], 1
    %s420 = scalar_lea.sflag [#allocation8], 1
    %421 = vsyncpa %s420, 1
    %422 = vsyncpa [#allocation4], 1
    %s423 = scalar_lea.sflag [#allocation4], 1
    %424 = vsyncpa %s423, 1
    %425 = vsyncpa [#allocation5], 1
    %s426 = scalar_lea.sflag [#allocation5], 1
    %427 = vsyncpa %s426, 1

</llo_original>
